<compile_context>
chip_gen: v6e
topology: v6e:2x2x1
jax: 0.10.0
libtpu: 0.0.40
codegen_flags: <defaults>
</compile_context>

<pallas_src>
import functools

import jax
import jax.numpy as jnp
from jax import lax
from jax.experimental import pallas as pl
from jax.experimental.pallas import tpu as pltpu

EMB = 64          # emb_size
CONS_NF = 5       # cons_nfeats
EDGE_NF = 1       # edge_nfeats
VAR_NF = 19       # var_nfeats
EPS = 1e-5        # torch.nn.LayerNorm default eps

TN = 128          # node-row tile (sublane-aligned)
TE = 128          # edge tile
OUT_LANES = 128   # lane-dense score output width


# ----------------------------- shared math helpers -----------------------------
def _layer_norm(x, g, b):
    mean = jnp.mean(x, axis=-1, keepdims=True)
    var = jnp.mean(jnp.square(x - mean), axis=-1, keepdims=True)
    return (x - mean) * lax.rsqrt(var + EPS) * g + b


def _linear(x, w, b=None):
    y = jnp.dot(x, w, preferred_element_type=jnp.float32)
    if b is not None:
        y = y + b
    return y


def _relu(x):
    return jnp.maximum(x, 0.0)


def _round_up(n, m):
    return ((n + m - 1) // m) * m


def _cparams(semantics):
    return pltpu.CompilerParams(
        dimension_semantics=semantics,
        vmem_limit_bytes=32 * 1024 * 1024,   # sized for v7x's 64 MiB physical VMEM
    )


# ------------------------- kernel 1: second embedding layer --------------------
def _embed2_kernel(x_ref, w_ref, b_ref, o_ref):
    o_ref[...] = _relu(_linear(x_ref[...], w_ref[...], b_ref[...]))


def _embed2(x, w2, b2):
    n_pad = x.shape[0]
    return pl.pallas_call(
        _embed2_kernel,
        out_shape=jax.ShapeDtypeStruct((n_pad, EMB), jnp.float32),
        grid=(n_pad // TN,),
        in_specs=[
            pl.BlockSpec((TN, EMB), lambda i: (i, 0)),
            pl.BlockSpec((EMB, EMB), lambda i: (0, 0)),
            pl.BlockSpec((1, EMB), lambda i: (0, 0)),
        ],
        out_specs=pl.BlockSpec((TN, EMB), lambda i: (i, 0)),
        compiler_params=_cparams(("parallel",)),
    )(x, w2, b2)


# ------------------- kernel 2: per-edge messages + scatter-add ------------------
def _edge_kernel(idx_j_ref, idx_i_ref,                 # SMEM (scalar prefetch)
                 left_ref, right_ref, wcat_ref, finw_ref, vecs_ref,   # VMEM inputs
                 agg_ref,                              # output accumulator (resident)
                 gl_ref, gr_ref, msg_ref,              # VMEM scratch
                 *, n_edges, te):
    e = pl.program_id(0)
    base = e * te

    @pl.when(e == 0)
    def _():
        agg_ref[...] = jnp.zeros_like(agg_ref)

    # gather source/target rows (index-based, no one-hot) into VMEM scratch
    def gather(t, carry):
        j = idx_j_ref[base + t]
        i = idx_i_ref[base + t]
        gl_ref[t, :] = left_ref[j, :]      # x_j
        gr_ref[t, :] = right_ref[i, :]     # x_i
        return carry

    lax.fori_loop(0, te, gather, 0)

    # fused K=128 projection: [x_i | x_j] @ vstack([W_left, W_right]) + folded bias
    cat = jnp.concatenate([gr_ref[...], gl_ref[...]], axis=-1)           # (TE, 128)
    pre = _linear(cat, wcat_ref[...]) + vecs_ref[0]
    h = _relu(_layer_norm(pre, vecs_ref[1], vecs_ref[2]))
    msg = _linear(h, finw_ref[...]) + vecs_ref[3]

    # zero the messages of padded edges (only the last tile has any)
    edge_id = base + lax.broadcasted_iota(jnp.int32, (te, 1), 0)
    msg_ref[...] = jnp.where(edge_id < n_edges, msg, 0.0)

    # scatter-add into the VMEM-resident target-node accumulator
    def scatter(t, carry):
        i = idx_i_ref[base + t]
        agg_ref[i, :] = agg_ref[i, :] + msg_ref[t, :]
        return carry

    lax.fori_loop(0, te, scatter, 0)


def _conv_edge(left_emb, right_emb, idx_j, idx_i, n_edges, w_cat, fin_w, vecs):
    nl_pad = left_emb.shape[0]
    nr_pad = right_emb.shape[0]
    e_pad = idx_j.shape[0]
    kernel = functools.partial(_edge_kernel, n_edges=n_edges, te=TE)
    cost = pl.CostEstimate(
        flops=int(e_pad * (2 * (2 * EMB) * EMB + 2 * EMB * EMB)),
        transcendentals=int(e_pad),
        bytes_accessed=int((nl_pad + 2 * nr_pad) * EMB * 4 + 2 * e_pad * 4),
    )
    return pl.pallas_call(
        kernel,
        out_shape=jax.ShapeDtypeStruct((nr_pad, EMB), jnp.float32),
        grid_spec=pltpu.PrefetchScalarGridSpec(
            num_scalar_prefetch=2,
            grid=(e_pad // TE,),
            in_specs=[
                pl.BlockSpec((nl_pad, EMB), lambda e, *_: (0, 0)),
                pl.BlockSpec((nr_pad, EMB), lambda e, *_: (0, 0)),
                pl.BlockSpec((2 * EMB, EMB), lambda e, *_: (0, 0)),
                pl.BlockSpec((EMB, EMB), lambda e, *_: (0, 0)),
                pl.BlockSpec((4, EMB), lambda e, *_: (0, 0)),
            ],
            out_specs=pl.BlockSpec((nr_pad, EMB), lambda e, *_: (0, 0)),
            scratch_shapes=[
                pltpu.VMEM((TE, EMB), jnp.float32),
                pltpu.VMEM((TE, EMB), jnp.float32),
                pltpu.VMEM((TE, EMB), jnp.float32),
            ],
        ),
        compiler_params=_cparams(("arbitrary",)),
        cost_estimate=cost,
    )(idx_j, idx_i, left_emb, right_emb, w_cat, fin_w, vecs)


# ---------------- kernel 3: post-conv output module (per right node) ------------
def _conv_node_kernel(agg_ref, right_ref, mats_ref, vecs_ref, o_ref):
    right = right_ref[...]
    a = _layer_norm(agg_ref[...], vecs_ref[0], vecs_ref[1])
    # split-weight form of concat([LN(agg), right]) @ W1  (no lane concat)
    h = _relu(_linear(a, mats_ref[0]) + _linear(right, mats_ref[1]) + vecs_ref[2])
    o_ref[...] = _linear(h, mats_ref[2]) + vecs_ref[3]


def _conv_node(agg, right_emb, mats, vecs):
    n_pad = right_emb.shape[0]
    return pl.pallas_call(
        _conv_node_kernel,
        out_shape=jax.ShapeDtypeStruct((n_pad, EMB), jnp.float32),
        grid=(n_pad // TN,),
        in_specs=[
            pl.BlockSpec((TN, EMB), lambda i: (i, 0)),
            pl.BlockSpec((TN, EMB), lambda i: (i, 0)),
            pl.BlockSpec((3, EMB, EMB), lambda i: (0, 0, 0)),
            pl.BlockSpec((4, EMB), lambda i: (0, 0)),
        ],
        out_specs=pl.BlockSpec((TN, EMB), lambda i: (i, 0)),
        compiler_params=_cparams(("parallel",)),
    )(agg, right_emb, mats, vecs)


# -------- kernel 4: output module + scoring head, lane-dense (N, 128) output ----
def _conv_node_head_kernel(agg_ref, right_ref, mats_ref, vecs_ref, w2pad_ref, o_ref):
    right = right_ref[...]
    a = _layer_norm(agg_ref[...], vecs_ref[0], vecs_ref[1])
    h = _relu(_linear(a, mats_ref[0]) + _linear(right, mats_ref[1]) + vecs_ref[2])
    y = _linear(h, mats_ref[2]) + vecs_ref[3]                  # conv output (var feats)
    z = _relu(_linear(y, mats_ref[3]) + vecs_ref[4])           # head hidden
    # final 64 -> 1 projection against a zero-padded (64, 128) weight so the store is
    # a full-width, unmasked 128-lane vst; the wrapper reads column 0.
    o_ref[...] = _linear(z, w2pad_ref[...])


def _conv_node_head(agg, right_emb, mats, vecs, w2_pad):
    n_pad = right_emb.shape[0]
    return pl.pallas_call(
        _conv_node_head_kernel,
        out_shape=jax.ShapeDtypeStruct((n_pad, OUT_LANES), jnp.float32),
        grid=(n_pad // TN,),
        in_specs=[
            pl.BlockSpec((TN, EMB), lambda i: (i, 0)),
            pl.BlockSpec((TN, EMB), lambda i: (i, 0)),
            pl.BlockSpec((4, EMB, EMB), lambda i: (0, 0, 0)),
            pl.BlockSpec((5, EMB), lambda i: (0, 0)),
            pl.BlockSpec((EMB, OUT_LANES), lambda i: (0, 0)),
        ],
        out_specs=pl.BlockSpec((TN, OUT_LANES), lambda i: (i, 0)),
        compiler_params=_cparams(("parallel",)),
    )(agg, right_emb, mats, vecs, w2_pad)


# ---------------------------------- wrapper ------------------------------------
def gnn_policy_forward(cons_feat, edge_indices, edge_feat, var_feat, params):
    del edge_feat  # size-1 LayerNorm == beta; folded into the message bias below
    p = list(params)
    (ce_g, ce_b, ce_w1, ce_b1, ce_w2, ce_b2,
     ee_g, ee_b,
     ve_g, ve_b, ve_w1, ve_b1, ve_w2, ve_b2) = p[:14]
    del ee_g  # multiplies an exactly-zero normalized value
    vc, cv = p[14:28], p[28:42]
    fo_w1, fo_b1, fo_w2 = p[42:45]

    n_cons = cons_feat.shape[0]
    n_var = var_feat.shape[0]
    n_edge = edge_indices.shape[1]
    nc_pad = _round_up(n_cons, TN)
    nv_pad = _round_up(n_var, TN)
    e_pad = _round_up(n_edge, TE)

    # tiny-K (5 / 19) first embedding layers hoisted to XLA, then pad rows
    cons_h1 = _relu(_linear(_layer_norm(cons_feat, ce_g, ce_b), ce_w1, ce_b1))
    var_h1 = _relu(_linear(_layer_norm(var_feat, ve_g, ve_b), ve_w1, ve_b1))
    cons_h1 = jnp.pad(cons_h1, ((0, nc_pad - n_cons), (0, 0)))
    var_h1 = jnp.pad(var_h1, ((0, nv_pad - n_var), (0, 0)))

    # second embedding layers (row-tiled Pallas)
    cons_emb = _embed2(cons_h1, ce_w2, ce_b2)
    var_emb = _embed2(var_h1, ve_w2, ve_b2)

    # int32 edge index arrays, padded (padded edges are masked inside the kernel)
    ei = edge_indices.astype(jnp.int32)
    idx_cons = jnp.pad(ei[0], (0, e_pad - n_edge))
    idx_var = jnp.pad(ei[1], (0, e_pad - n_edge))

    def pack_conv(pr):
        (fl_w, fl_b, fe_w, fr_w, fin_g, fin_b, fin_w, fin_b2,
         post_g, post_b, o1_w, o1_b, o2_w, o2_b) = pr
        # edge_embedding(e) == ee_b exactly, so its linear is a constant row folded here
        msg_bias = (fl_b + ee_b[0, 0] * fe_w).reshape(EMB)
        w_cat = jnp.concatenate([fl_w, fr_w], axis=0)          # (128, 64): [x_i | x_j]
        edge_vecs = jnp.stack(
            [msg_bias, fin_g.reshape(EMB), fin_b.reshape(EMB), fin_b2.reshape(EMB)], 0)
        node_mats = jnp.stack([o1_w[:EMB], o1_w[EMB:], o2_w], 0)
        node_vecs = jnp.stack(
            [post_g.reshape(EMB), post_b.reshape(EMB),
             o1_b.reshape(EMB), o2_b.reshape(EMB)], 0)
        return w_cat, fin_w, edge_vecs, node_mats, node_vecs

    vc_wcat, vc_finw, vc_evecs, vc_nmats, vc_nvecs = pack_conv(vc)
    cv_wcat, cv_finw, cv_evecs, cv_nmats, cv_nvecs = pack_conv(cv)

    # conv_v_to_c: reversed edges (source j = variable, target i = constraint)
    agg_c = _conv_edge(var_emb, cons_emb, idx_var, idx_cons, n_edge,
                       vc_wcat, vc_finw, vc_evecs)
    cons2 = _conv_node(agg_c, cons_emb, vc_nmats, vc_nvecs)

    # conv_c_to_v: original edges (source j = constraint, target i = variable)
    agg_v = _conv_edge(cons2, var_emb, idx_cons, idx_var, n_edge,
                       cv_wcat, cv_finw, cv_evecs)

    # fused conv output module + scoring head
    head_mats = jnp.concatenate([cv_nmats, fo_w1[None]], axis=0)          # (4,64,64)
    head_vecs = jnp.concatenate([cv_nvecs, fo_b1.reshape(1, EMB)], axis=0)  # (5,64)
    w2_pad = jnp.pad(fo_w2, ((0, 0), (0, OUT_LANES - 1)))                 # (64,128)
    scores = _conv_node_head(agg_v, var_emb, head_mats, head_vecs, w2_pad)
    return scores[:n_var, 0]                                              # .squeeze(-1)


# ------------------------------ parameter setup --------------------------------
def init_params(key):
    def split():
        nonlocal key
        key, sub = jax.random.split(key)
        return sub

    def dense(shape, scale=0.1):
        return jax.random.normal(split(), shape, jnp.float32) * scale

    def ln(d):
        return 1.0 + dense((1, d), 0.05), dense((1, d), 0.05)

    def conv_params():
        fin_g, fin_b = ln(EMB)
        post_g, post_b = ln(EMB)
        return [
            dense((EMB, EMB)), dense((1, EMB)),          # feature_module_left  (W, b)
            dense((EDGE_NF, EMB)),                       # feature_module_edge  (W, no bias)
            dense((EMB, EMB)),                           # feature_module_right (W, no bias)
            fin_g, fin_b, dense((EMB, EMB)), dense((1, EMB)),   # feature_module_final
            post_g, post_b,                              # post_conv_module LayerNorm
            dense((2 * EMB, EMB)), dense((1, EMB)),      # output_module Linear 1
            dense((EMB, EMB)), dense((1, EMB)),          # output_module Linear 2
        ]

    ce_g, ce_b = ln(CONS_NF)
    ee_g, ee_b = ln(EDGE_NF)
    ve_g, ve_b = ln(VAR_NF)
    params = [
        ce_g, ce_b, dense((CONS_NF, EMB)), dense((1, EMB)),
        dense((EMB, EMB)), dense((1, EMB)),
        ee_g, ee_b,
        ve_g, ve_b, dense((VAR_NF, EMB)), dense((1, EMB)),
        dense((EMB, EMB)), dense((1, EMB)),
    ]
    params += conv_params()      # conv_v_to_c
    params += conv_params()      # conv_c_to_v
    params += [dense((EMB, EMB)), dense((1, EMB)), dense((EMB, 1))]   # final head
    return params


# -------------------------- pure-JAX reference check ---------------------------
def reference_forward(cons_feat, edge_indices, edge_feat, var_feat, params):
    p = list(params)
    (ce_g, ce_b, ce_w1, ce_b1, ce_w2, ce_b2, ee_g, ee_b,
     ve_g, ve_b, ve_w1, ve_b1, ve_w2, ve_b2) = p[:14]
    vc, cv = p[14:28], p[28:42]
    fo_w1, fo_b1, fo_w2 = p[42:45]

    def conv(left, e_idx, edge, right, pr):
        (fl_w, fl_b, fe_w, fr_w, fin_g, fin_b, fin_w, fin_b2,
         post_g, post_b, o1_w, o1_b, o2_w, o2_b) = pr
        j, i = e_idx[0], e_idx[1]
        msg = _linear(right[i], fl_w, fl_b) + _linear(edge, fe_w) + _linear(left[j], fr_w)
        msg = _linear(_relu(_layer_norm(msg, fin_g, fin_b)), fin_w, fin_b2)
        agg = jnp.zeros((right.shape[0], EMB), jnp.float32).at[i].add(msg)
        h = jnp.concatenate([_layer_norm(agg, post_g, post_b), right], -1)
        return _linear(_relu(_linear(h, o1_w, o1_b)), o2_w, o2_b)

    cons_e = _relu(_linear(_relu(_linear(_layer_norm(cons_feat, ce_g, ce_b),
                                         ce_w1, ce_b1)), ce_w2, ce_b2))
    edge_e = _layer_norm(edge_feat, ee_g, ee_b)
    var_e = _relu(_linear(_relu(_linear(_layer_norm(var_feat, ve_g, ve_b),
                                        ve_w1, ve_b1)), ve_w2, ve_b2))
    rev = jnp.stack([edge_indices[1], edge_indices[0]], 0)
    cons_e = conv(var_e, rev, edge_e, cons_e, vc)
    var_e = conv(cons_e, edge_indices, edge_e, var_e, cv)
    return _linear(_relu(_linear(var_e, fo_w1, fo_b1)), fo_w2)[:, 0]


if __name__ == "__main__":
    key = jax.random.PRNGKey(0)
    k_cons, k_var, k_edge, k_ei, k_params = jax.random.split(key, 5)

    # small but multi-tile: 2 constraint tiles, 3 variable tiles, 8 edge tiles
    n_cons, n_var, n_edge = 200, 300, 900
    cons_feat = jax.random.normal(k_cons, (n_cons, CONS_NF), jnp.float32)
    var_feat = jax.random.normal(k_var, (n_var, VAR_NF), jnp.float32)
    edge_feat = jax.random.normal(k_edge, (n_edge, EDGE_NF), jnp.float32)
    kc, kv = jax.random.split(k_ei)
    edge_indices = jnp.stack(
        [jax.random.randint(kc, (n_edge,), 0, n_cons),
         jax.random.randint(kv, (n_edge,), 0, n_var)], axis=0)

    params = init_params(k_params)

    out = jax.block_until_ready(
        gnn_policy_forward(cons_feat, edge_indices, edge_feat, var_feat, params))

    ref = reference_forward(cons_feat, edge_indices, edge_feat, var_feat, params)
    assert out.shape == (n_var,)
    assert jnp.allclose(out, ref, atol=2e-3, rtol=2e-3), \
        float(jnp.max(jnp.abs(out - ref)))

    print("KERNEL_OK")
</pallas_src>

<mosaic_0001>
module attributes {stable_mosaic.version = 11 : i64} {
  func.func @_embed2_kernel(%arg0: i32, %arg1: memref<128x64xf32, #tpu.memory_space<vmem>>, %arg2: memref<64x64xf32, #tpu.memory_space<vmem>>, %arg3: memref<1x64xf32, #tpu.memory_space<vmem>>, %arg4: memref<128x64xf32, #tpu.memory_space<vmem>>) attributes {dimension_semantics = [#tpu.dimension_semantics<parallel>], iteration_bounds = array<i64: 2>, scalar_prefetch = 0 : i64, scratch_operands = 0 : i64, tpu.core_type = #tpu.core_type<tc>, window_params = [{transform_indices = @transform_0, window_bounds = array<i64: 128, 64>}, {pipeline_mode = #tpu.pipeline_mode<synchronous>, transform_indices = @transform_1, window_bounds = array<i64: 64, 64>}, {pipeline_mode = #tpu.pipeline_mode<synchronous>, transform_indices = @transform_2, window_bounds = array<i64: 1, 64>}, {transform_indices = @transform_3, window_bounds = array<i64: 128, 64>}]} {
    %c0 = arith.constant 0 : index
    %c0_0 = arith.constant 0 : index
    %0 = vector.load %arg1[%c0, %c0_0] : memref<128x64xf32, #tpu.memory_space<vmem>>, vector<128x64xf32>
    %c0_1 = arith.constant 0 : index
    %c0_2 = arith.constant 0 : index
    %1 = vector.load %arg2[%c0_1, %c0_2] : memref<64x64xf32, #tpu.memory_space<vmem>>, vector<64x64xf32>
    %c0_3 = arith.constant 0 : index
    %c0_4 = arith.constant 0 : index
    %2 = vector.load %arg3[%c0_3, %c0_4] : memref<1x64xf32, #tpu.memory_space<vmem>>, vector<1x64xf32>
    %cst = arith.constant dense<0.000000e+00> : vector<128x64xf32>
    %3 = tpu.matmul %0, %1, %cst {dimension_numbers = #tpu.dot_dimension_numbers<[1], [0], [0], [1], [0, 0, 1, 1], [], []>} : vector<128x64xf32>, vector<64x64xf32>, vector<128x64xf32> -> vector<128x64xf32>
    %4 = vector.broadcast %2 : vector<1x64xf32> to vector<128x64xf32>
    %5 = arith.addf %3, %4 : vector<128x64xf32>
    %cst_5 = arith.constant 0.000000e+00 : f32
    %6 = vector.broadcast %cst_5 : f32 to vector<128x64xf32>
    %7 = arith.maximumf %5, %6 : vector<128x64xf32>
    %c0_6 = arith.constant 0 : index
    %c0_7 = arith.constant 0 : index
    %8 = vector.load %arg4[%c0_6, %c0_7] : memref<128x64xf32, #tpu.memory_space<vmem>>, vector<128x64xf32>
    tpu.vector_store %arg4[%c0_6, %c0_7], %7 {strides = array<i32>} : memref<128x64xf32, #tpu.memory_space<vmem>>, vector<128x64xf32>,
    return
  }
  func.func @transform_0(%arg0: i32) -> (i32, i32) {
    %c0_i32 = arith.constant 0 : i32
    %c0_i32_0 = arith.constant 0 : i32
    return %arg0, %c0_i32 : i32, i32
  }
  func.func @transform_1(%arg0: i32) -> (i32, i32) {
    %c0_i32 = arith.constant 0 : i32
    %c0_i32_0 = arith.constant 0 : i32
    %c0_i32_1 = arith.constant 0 : i32
    return %c0_i32, %c0_i32_0 : i32, i32
  }
  func.func @transform_2(%arg0: i32) -> (i32, i32) {
    %c0_i32 = arith.constant 0 : i32
    %c0_i32_0 = arith.constant 0 : i32
    %c0_i32_1 = arith.constant 0 : i32
    return %c0_i32, %c0_i32_0 : i32, i32
  }
  func.func @transform_3(%arg0: i32) -> (i32, i32) {
    %c0_i32 = arith.constant 0 : i32
    %c0_i32_0 = arith.constant 0 : i32
    return %arg0, %c0_i32 : i32, i32
  }
}

</mosaic_0001>

<llo_original>
// kernel: tpu_custom_call.1
$region0: #{tpu_custom_call.1}
  #allocation0 [shape = 'u32[]', space=smem, size = 0x4, offset = 0x4, fixed_abs, tag = 'smem constant byte address 0x4 - core index']
  #allocation1 [shape = 'u32[144,128]{1,0:T(1,128)}', space=vmem, size = 0x12000, scoped, tag = 'internal scratch']
  %s0 = inlined_call_operand.vmem [shape: f32[256,64], index: 0, kind: input, shape index: {}]
  %s1 = inlined_call_operand.vmem [shape: f32[64,64], index: 1, kind: input, shape index: {}]
  %s2 = inlined_call_operand.vmem [shape: f32[1,64], index: 2, kind: input, shape index: {}]
  %s3 = inlined_call_operand.vmem [shape: f32[256,64], index: 3, kind: output, shape index: {}]
  %s4 = sld [smem:[#allocation0]]
  $region45: #{tpu_custom_call.1} parent=0
    _
  %s6 = ssub.s32 1, %s4
  %s7 = scalar_select 0, %s6, %s4
  loop: start=0, step=1, limit=4
  $region2: #{tpu_custom_call.1} parent=0 // loop_pre_header
    _
  $region3: #{tpu_custom_call.1} parent=0 // loop_header
    %s9 = sphi 0, %s13
    %p10 = scmp.ge.s32.totalorder %s9, 4
    %s19 = sphi 0, %s21
    %s22 = sphi 0, %s19
    %s23 = sphi 0, %s22
    %s39 = sphi 0, %s23
    %s43 = sphi 0, %s43
    %s45 = sphi 0, %s43
    %s46 = sphi 0, %s45
    %s60 = sphi 0, %s46
    %s64 = sphi 0, %s64
    %s66 = sphi 0, %s64
    %s67 = sphi 0, %s66
    %s81 = sphi 0, %s67
    %s87 = sphi 0, %s89
    %s90 = sphi 0, %s87
    %s91 = sphi 0, %s90
    %s107 = sphi 0, %s91
  $region4: #{tpu_custom_call.1} parent=0 // loop_header_branch
    %12 = sbr.rel (%p10) target = $region8
  $region5: #{tpu_custom_call.1} parent=0 // loop_body
    %s14 = ssub.s32 %s9, 1
    %s15 = ssub.s32 %s9, 2
    %s16 = sadd.s32 %s9, 1
    %s17 = ssub.s32 %s9, %s16
    %p18 = scmp.eq.s32.totalorder %s17, 0
    %s20 = sadd.s32 %s19, 1
    %s21 = scalar_select %p18, %s19, %s20
    %p24 = pneg %p18
    %p25 = scmp.eq.s32.totalorder %s9, 1
    %p26 = por %p24, %p25
    %p27 = scmp.ne.s32.totalorder %s19, %s22
    %p28 = scmp.eq.s32.totalorder %s9, 0
    %p29 = por %p27, %p28
    %p30 = scmp.ne.s32.totalorder %s19, %s22
    %p31 = scmp.eq.s32.totalorder %s14, 1
    %p32 = por %p30, %p31
    %p33 = scmp.ne.s32.totalorder %s22, %s23
    %p34 = scmp.eq.s32.totalorder %s14, 0
    %p35 = por %p33, %p34
    %p36 = scmp.ne.s32.totalorder %s22, %s23
    %p37 = scmp.eq.s32.totalorder %s15, 1
    %p38 = por %p36, %p37
    %p40 = scmp.ne.s32.totalorder %s23, %s39
    %p41 = scmp.eq.s32.totalorder %s15, 0
    %p42 = por %p40, %p41
    %s44 = sadd.s32 %s43, 1
    %p47 = scmp.eq.s32.totalorder %s9, 1
    %p48 = scmp.ne.s32.totalorder %s43, %s45
    %p49 = scmp.eq.s32.totalorder %s9, 0
    %p50 = por %p48, %p49
    %p51 = scmp.ne.s32.totalorder %s43, %s45
    %p52 = scmp.eq.s32.totalorder %s14, 1
    %p53 = por %p51, %p52
    %p54 = scmp.ne.s32.totalorder %s45, %s46
    %p55 = scmp.eq.s32.totalorder %s14, 0
    %p56 = por %p54, %p55
    %p57 = scmp.ne.s32.totalorder %s45, %s46
    %p58 = scmp.eq.s32.totalorder %s15, 1
    %p59 = por %p57, %p58
    %p61 = scmp.ne.s32.totalorder %s46, %s60
    %p62 = scmp.eq.s32.totalorder %s15, 0
    %p63 = por %p61, %p62
    %s65 = sadd.s32 %s64, 1
    %p68 = scmp.eq.s32.totalorder %s9, 1
    %p69 = scmp.ne.s32.totalorder %s64, %s66
    %p70 = scmp.eq.s32.totalorder %s9, 0
    %p71 = por %p69, %p70
    %p72 = scmp.ne.s32.totalorder %s64, %s66
    %p73 = scmp.eq.s32.totalorder %s14, 1
    %p74 = por %p72, %p73
    %p75 = scmp.ne.s32.totalorder %s66, %s67
    %p76 = scmp.eq.s32.totalorder %s14, 0
    %p77 = por %p75, %p76
    %p78 = scmp.ne.s32.totalorder %s66, %s67
    %p79 = scmp.eq.s32.totalorder %s15, 1
    %p80 = por %p78, %p79
    %p82 = scmp.ne.s32.totalorder %s67, %s81
    %p83 = scmp.eq.s32.totalorder %s15, 0
    %p84 = por %p82, %p83
    %s85 = ssub.s32 %s9, %s16
    %p86 = scmp.eq.s32.totalorder %s85, 0
    %s88 = sadd.s32 %s87, 1
    %s89 = scalar_select %p86, %s87, %s88
    %p92 = pneg %p86
    %p93 = scmp.eq.s32.totalorder %s9, 1
    %p94 = por %p92, %p93
    %p95 = scmp.ne.s32.totalorder %s87, %s90
    %p96 = scmp.eq.s32.totalorder %s9, 0
    %p97 = por %p95, %p96
    %p98 = scmp.ne.s32.totalorder %s87, %s90
    %p99 = scmp.eq.s32.totalorder %s14, 1
    %p100 = por %p98, %p99
    %p101 = scmp.ne.s32.totalorder %s90, %s91
    %p102 = scmp.eq.s32.totalorder %s14, 0
    %p103 = por %p101, %p102
    %p104 = scmp.ne.s32.totalorder %s90, %s91
    %p105 = scmp.eq.s32.totalorder %s15, 1
    %p106 = por %p104, %p105
    %p108 = scmp.ne.s32.totalorder %s91, %s107
    %p109 = scmp.eq.s32.totalorder %s15, 0
    %p110 = por %p108, %p109
    %p111 = scmp.le.s32.totalorder 1, %s9
    %p112 = scmp.lt.s32.totalorder %s9, 3
    %p113 = pnand %p111, %p112
    %p114 = pneg %p113
    // Predicated region
    $region9: #{tpu_custom_call.1} parent=5 // pred_check
      _
    $region10: #{tpu_custom_call.1} parent=5 // pred_check_branch
      %116 = sbr.rel (%p113) target = $region12
    $region11: #{tpu_custom_call.1} parent=5 // pred_region
      %s117 = ssub.s32 %s9, 1
      // Predicated region
      $region13: #{tpu_custom_call.1} parent=11 // pred_check
        %p118 = pneg %p56
      $region14: #{tpu_custom_call.1} parent=11 // pred_check_branch
        %120 = sbr.rel (%p118) target = $region16
      $region15: #{tpu_custom_call.1} parent=11 // pred_region
        _
      $region16: #{tpu_custom_call.1} parent=11 // pred_fallthru
        _
      // Predicated region
      $region17: #{tpu_custom_call.1} parent=11 // pred_check
        %p121 = pneg %p77
      $region18: #{tpu_custom_call.1} parent=11 // pred_check_branch
        %123 = sbr.rel (%p121) target = $region20
      $region19: #{tpu_custom_call.1} parent=11 // pred_region
        _
      $region20: #{tpu_custom_call.1} parent=11 // pred_fallthru
        _
    $region12: #{tpu_custom_call.1} parent=5 // pred_fallthru
      _
    %p124 = scmp.lt.s32.totalorder %s9, 2
    // Predicated region
    $region21: #{tpu_custom_call.1} parent=5 // pred_check
      %p125 = pneg %p124
    $region22: #{tpu_custom_call.1} parent=5 // pred_check_branch
      %127 = sbr.rel (%p125) target = $region24
    $region23: #{tpu_custom_call.1} parent=5 // pred_region
      // Predicated region
      $region25: #{tpu_custom_call.1} parent=23 // pred_check
        %p128 = pneg %p29
      $region26: #{tpu_custom_call.1} parent=23 // pred_check_branch
        %130 = sbr.rel (%p128) target = $region28
      $region27: #{tpu_custom_call.1} parent=23 // pred_region
        %s131 = smul.u32 16, %s9
        %p132 = scmp.lt.s32.totalorder %s131, 31
        %s133 = scalar_select %p132, %s131, 31
        %s134 = smul.addr %s133, 8
        %s135 = scalar_lea.vmem %s0, %s134
        %s136 = smul.u32 16, %s9
      $region28: #{tpu_custom_call.1} parent=23 // pred_fallthru
        _
    $region24: #{tpu_custom_call.1} parent=5 // pred_fallthru
      _
    %p137 = scmp.le.s32.totalorder 1, %s9
    %p138 = scmp.lt.s32.totalorder %s9, 3
    %p139 = pnand %p137, %p138
    %p140 = pneg %p139
    // Predicated region
    $region29: #{tpu_custom_call.1} parent=5 // pred_check
      _
    $region30: #{tpu_custom_call.1} parent=5 // pred_check_branch
      %142 = sbr.rel (%p139) target = $region32
    $region31: #{tpu_custom_call.1} parent=5 // pred_region
      %s143 = ssub.s32 %s9, 1
      %s144 = smul.u32 16, %s14
      %p145 = scmp.lt.s32.totalorder %s144, 31
      %s146 = scalar_select %p145, %s144, 31
      %s147 = smul.addr %s146, 8
      %s148 = scalar_lea.vmem %s0, %s147
      %p149 = pneg %p35
      %p150 = pneg %p32
      %p151 = pneg %p56
      %p152 = pneg %p53
      %p153 = pneg %p77
      %p154 = pneg %p74
      %p155 = pneg %p103
      %p156 = pneg %p100
      %s157 = smul.u32 16, %s14
      %p158 = scmp.lt.s32.totalorder %s157, 31
      %s159 = scalar_select %p158, %s157, 31
      %s160 = smul.addr %s159, 8
      %s161 = scalar_lea.vmem %s3, %s160
      %s162 = smul.u32 16, %s14
      %p163 = scmp.lt.s32.totalorder %s162, 31
      %s164 = scalar_select %p163, %s162, 31
      %s165 = smul.addr %s164, 8
      %s166 = scalar_lea.vmem %s0, %s165
      %s167 = smul.u32 16, %s14
      %s168 = smul.u32 16, %s14
      %p169 = scmp.lt.s32.totalorder %s168, 31
      %s170 = scalar_select %p169, %s168, 31
      %s171 = smul.addr %s170, 8
      %s172 = scalar_lea.vmem %s3, %s171
      %s173 = smul.u32 16, %s14
      %v174 = vld [vmem:[%s166] sm:$0xff]
      %v175 = vld [vmem:[%s166 + $0x8] sm:$0xff]
      %v176 = vld [vmem:[%s166 + $0x10] sm:$0xff]
      %v177 = vld [vmem:[%s166 + $0x18] sm:$0xff]
      %v178 = vld [vmem:[%s166 + $0x20] sm:$0xff]
      %v179 = vld [vmem:[%s166 + $0x28] sm:$0xff]
      %v180 = vld [vmem:[%s166 + $0x30] sm:$0xff]
      %v181 = vld [vmem:[%s166 + $0x38] sm:$0xff]
      %v182 = vld [vmem:[%s166 + $0x40] sm:$0xff]
      %v183 = vld [vmem:[%s166 + $0x48] sm:$0xff]
      %v184 = vld [vmem:[%s166 + $0x50] sm:$0xff]
      %v185 = vld [vmem:[%s166 + $0x58] sm:$0xff]
      %v186 = vld [vmem:[%s166 + $0x60] sm:$0xff]
      %v187 = vld [vmem:[%s166 + $0x68] sm:$0xff]
      %v188 = vld [vmem:[%s166 + $0x70] sm:$0xff]
      %v189 = vld [vmem:[%s166 + $0x78] sm:$0xff]
      %v190 = vld [vmem:[%s1] sm:$0xff]
      %v191 = vld [vmem:[%s1 + $0x8] sm:$0xff]
      %v192 = vld [vmem:[%s1 + $0x10] sm:$0xff]
      %v193 = vld [vmem:[%s1 + $0x18] sm:$0xff]
      %v194 = vld [vmem:[%s1 + $0x20] sm:$0xff]
      %v195 = vld [vmem:[%s1 + $0x28] sm:$0xff]
      %v196 = vld [vmem:[%s1 + $0x30] sm:$0xff]
      %v197 = vld [vmem:[%s1 + $0x38] sm:$0xff]
      %v198 = vld [vmem:[%s2] sm:$0x1]
      %v200 = vlaneseq
      %v201 = vshrl.u32 %v200, 7
      %v202 = vsub.s32 0, %v201
      %v203 = vrot.slane %v198, %v202
      %vm205 = vcmask 523264
      %v207 = vsel %vm205, %v174, 0
      %v210 = vsel %vm205, %v175, 0
      %v213 = vsel %vm205, %v176, 0
      %v216 = vsel %vm205, %v177, 0
      %v219 = vsel %vm205, %v178, 0
      %v222 = vsel %vm205, %v179, 0
      %v225 = vsel %vm205, %v180, 0
      %v228 = vsel %vm205, %v181, 0
      %v231 = vsel %vm205, %v182, 0
      %v234 = vsel %vm205, %v183, 0
      %v237 = vsel %vm205, %v184, 0
      %v240 = vsel %vm205, %v185, 0
      %v243 = vsel %vm205, %v186, 0
      %v246 = vsel %vm205, %v187, 0
      %v249 = vsel %vm205, %v188, 0
      %v252 = vsel %vm205, %v189, 0
      %254 = vmatprep.subr.mxu0 0.0
      %255 = vmatpush1.msra.mxu0 0.0
      %256 = vmatprep.subr.mxu0 0.0
      %257 = vmatpush1.msra.mxu0 0.0
      %258 = vmatprep.subr.mxu0 0.0
      %259 = vmatpush1.msra.mxu0 0.0
      %260 = vmatprep.subr.mxu0 0.0
      %261 = vmatpush1.msra.mxu0 0.0
      %262 = vmatprep.subr.mxu0 0.0
      %263 = vmatpush1.msra.mxu0 0.0
      %264 = vmatprep.subr.mxu0 0.0
      %265 = vmatpush1.msra.mxu0 0.0
      %266 = vmatprep.subr.mxu0 0.0
      %267 = vmatpush1.msra.mxu0 0.0
      %268 = vmatprep.subr.mxu0 0.0
      %269 = vmatpush1.msra.mxu0 0.0
      %270 = vmatprep.subr.mxu0 0.0
      %271 = vmatpush1.msra.mxu0 %v197
      %272 = vmatprep.subr.mxu0 0.0
      %273 = vmatpush1.msra.mxu0 %v196
      %274 = vmatprep.subr.mxu0 0.0
      %275 = vmatpush1.msra.mxu0 %v195
      %276 = vmatprep.subr.mxu0 0.0
      %277 = vmatpush1.msra.mxu0 %v194
      %278 = vmatprep.subr.mxu0 0.0
      %279 = vmatpush1.msra.mxu0 %v193
      %280 = vmatprep.subr.mxu0 0.0
      %281 = vmatpush1.msra.mxu0 %v192
      %282 = vmatprep.subr.mxu0 0.0
      %283 = vmatpush1.msra.mxu0 %v191
      %284 = vmatprep.subr.mxu0 0.0
      %285 = vmatpush1.msra.mxu0 %v190
      %286 = vmatprep.subr.mxu0 0.0
      %287 = vmatpush2.msra.mxu0 0.0
      %288 = vmatprep.subr.mxu0 0.0
      %289 = vmatpush2.msra.mxu0 0.0
      %290 = vmatprep.subr.mxu0 0.0
      %291 = vmatpush2.msra.mxu0 0.0
      %292 = vmatprep.subr.mxu0 0.0
      %293 = vmatpush2.msra.mxu0 0.0
      %294 = vmatprep.subr.mxu0 0.0
      %295 = vmatpush2.msra.mxu0 0.0
      %296 = vmatprep.subr.mxu0 0.0
      %297 = vmatpush2.msra.mxu0 0.0
      %298 = vmatprep.subr.mxu0 0.0
      %299 = vmatpush2.msra.mxu0 0.0
      %300 = vmatprep.subr.mxu0 0.0
      %301 = vmatpush2.msra.mxu0 0.0
      %302 = vmatprep.subr.mxu0 0.0
      %303 = vmatpush2.msra.mxu0 0.0
      %304 = vmatprep.subr.mxu0 0.0
      %305 = vmatpush2.msra.mxu0 0.0
      %306 = vmatprep.subr.mxu0 0.0
      %307 = vmatpush2.msra.mxu0 0.0
      %308 = vmatprep.subr.mxu0 0.0
      %309 = vmatpush2.msra.mxu0 0.0
      %310 = vmatprep.subr.mxu0 0.0
      %311 = vmatpush2.msra.mxu0 0.0
      %312 = vmatprep.subr.mxu0 0.0
      %313 = vmatpush2.msra.mxu0 0.0
      %314 = vmatprep.subr.mxu0 0.0
      %315 = vmatpush2.msra.mxu0 0.0
      %316 = vmatprep.subr.mxu0 0.0
      %317 = vmatpush2.msra.mxu0 0.0
      %318 = vmatprep.mubr.f32.mxu0 0.0
      %319 = vmatmul.mubr.f32.gmra.mxu0 %v207
      %v320 = vpop.f32.mrf.mxu0
      %v321 = vadd.f32 %v203, %v320
      %v322 = vpop.f32.mrf.mxu0
      %323 = vmatprep.mubr.f32.mxu0 0.0
      %324 = vmatmul.mubr.f32.gmra.mxu0 %v210
      %v325 = vpop.f32.mrf.mxu0
      %v326 = vadd.f32 %v203, %v325
      %v327 = vpop.f32.mrf.mxu0
      %328 = vmatprep.mubr.f32.mxu0 0.0
      %329 = vmatmul.mubr.f32.gmra.mxu0 %v213
      %v330 = vpop.f32.mrf.mxu0
      %v331 = vadd.f32 %v203, %v330
      %v332 = vpop.f32.mrf.mxu0
      %333 = vmatprep.mubr.f32.mxu0 0.0
      %334 = vmatmul.mubr.f32.gmra.mxu0 %v216
      %v335 = vpop.f32.mrf.mxu0
      %v336 = vadd.f32 %v203, %v335
      %v337 = vpop.f32.mrf.mxu0
      %338 = vmatprep.mubr.f32.mxu0 0.0
      %339 = vmatmul.mubr.f32.gmra.mxu0 %v219
      %v340 = vpop.f32.mrf.mxu0
      %v341 = vadd.f32 %v203, %v340
      %v342 = vpop.f32.mrf.mxu0
      %343 = vmatprep.mubr.f32.mxu0 0.0
      %344 = vmatmul.mubr.f32.gmra.mxu0 %v222
      %v345 = vpop.f32.mrf.mxu0
      %v346 = vadd.f32 %v203, %v345
      %v347 = vpop.f32.mrf.mxu0
      %348 = vmatprep.mubr.f32.mxu0 0.0
      %349 = vmatmul.mubr.f32.gmra.mxu0 %v225
      %v350 = vpop.f32.mrf.mxu0
      %v351 = vadd.f32 %v203, %v350
      %v352 = vpop.f32.mrf.mxu0
      %353 = vmatprep.mubr.f32.mxu0 0.0
      %354 = vmatmul.mubr.f32.gmra.mxu0 %v228
      %v355 = vpop.f32.mrf.mxu0
      %v356 = vadd.f32 %v203, %v355
      %v357 = vpop.f32.mrf.mxu0
      %358 = vmatprep.mubr.f32.mxu0 0.0
      %359 = vmatmul.mubr.f32.gmra.mxu0 %v231
      %v360 = vpop.f32.mrf.mxu0
      %v361 = vadd.f32 %v203, %v360
      %v362 = vpop.f32.mrf.mxu0
      %363 = vmatprep.mubr.f32.mxu0 0.0
      %364 = vmatmul.mubr.f32.gmra.mxu0 %v234
      %v365 = vpop.f32.mrf.mxu0
      %v366 = vadd.f32 %v203, %v365
      %v367 = vpop.f32.mrf.mxu0
      %368 = vmatprep.mubr.f32.mxu0 0.0
      %369 = vmatmul.mubr.f32.gmra.mxu0 %v237
      %v370 = vpop.f32.mrf.mxu0
      %v371 = vadd.f32 %v203, %v370
      %v372 = vpop.f32.mrf.mxu0
      %373 = vmatprep.mubr.f32.mxu0 0.0
      %374 = vmatmul.mubr.f32.gmra.mxu0 %v240
      %v375 = vpop.f32.mrf.mxu0
      %v376 = vadd.f32 %v203, %v375
      %v377 = vpop.f32.mrf.mxu0
      %378 = vmatprep.mubr.f32.mxu0 0.0
      %379 = vmatmul.mubr.f32.gmra.mxu0 %v243
      %v380 = vpop.f32.mrf.mxu0
      %v381 = vadd.f32 %v203, %v380
      %v382 = vpop.f32.mrf.mxu0
      %383 = vmatprep.mubr.f32.mxu0 0.0
      %384 = vmatmul.mubr.f32.gmra.mxu0 %v246
      %v385 = vpop.f32.mrf.mxu0
      %v386 = vadd.f32 %v203, %v385
      %v387 = vpop.f32.mrf.mxu0
      %388 = vmatprep.mubr.f32.mxu0 0.0
      %389 = vmatmul.mubr.f32.gmra.mxu0 %v249
      %v390 = vpop.f32.mrf.mxu0
      %v391 = vadd.f32 %v203, %v390
      %v392 = vpop.f32.mrf.mxu0
      %393 = vmatprep.mubr.f32.mxu0 0.0
      %394 = vmatmul.mubr.f32.gmra.mxu0 %v252
      %v395 = vpop.f32.mrf.mxu0
      %v396 = vadd.f32 %v203, %v395
      %v397 = vpop.f32.mrf.mxu0
      %398 = vdwg.mxu0
      %v399 = vmax.f32 %v321, 0.0
      %v400 = vmax.f32 %v326, 0.0
      %v401 = vmax.f32 %v331, 0.0
      %v402 = vmax.f32 %v336, 0.0
      %v403 = vmax.f32 %v341, 0.0
      %v404 = vmax.f32 %v346, 0.0
      %v405 = vmax.f32 %v351, 0.0
      %v406 = vmax.f32 %v356, 0.0
      %v407 = vmax.f32 %v361, 0.0
      %v408 = vmax.f32 %v366, 0.0
      %v409 = vmax.f32 %v371, 0.0
      %v410 = vmax.f32 %v376, 0.0
      %v411 = vmax.f32 %v381, 0.0
      %v412 = vmax.f32 %v386, 0.0
      %v413 = vmax.f32 %v391, 0.0
      %v414 = vmax.f32 %v396, 0.0
      %415 = vst.msk [vmem:[%s172] sm:$0xff] %vm205, %v399
      %416 = vst.msk [vmem:[%s172 + $0x8] sm:$0xff] %vm205, %v400
      %417 = vst.msk [vmem:[%s172 + $0x10] sm:$0xff] %vm205, %v401
      %418 = vst.msk [vmem:[%s172 + $0x18] sm:$0xff] %vm205, %v402
      %419 = vst.msk [vmem:[%s172 + $0x20] sm:$0xff] %vm205, %v403
      %420 = vst.msk [vmem:[%s172 + $0x28] sm:$0xff] %vm205, %v404
      %421 = vst.msk [vmem:[%s172 + $0x30] sm:$0xff] %vm205, %v405
      %422 = vst.msk [vmem:[%s172 + $0x38] sm:$0xff] %vm205, %v406
      %423 = vst.msk [vmem:[%s172 + $0x40] sm:$0xff] %vm205, %v407
      %424 = vst.msk [vmem:[%s172 + $0x48] sm:$0xff] %vm205, %v408
      %425 = vst.msk [vmem:[%s172 + $0x50] sm:$0xff] %vm205, %v409
      %426 = vst.msk [vmem:[%s172 + $0x58] sm:$0xff] %vm205, %v410
      %427 = vst.msk [vmem:[%s172 + $0x60] sm:$0xff] %vm205, %v411
      %428 = vst.msk [vmem:[%s172 + $0x68] sm:$0xff] %vm205, %v412
      %429 = vst.msk [vmem:[%s172 + $0x70] sm:$0xff] %vm205, %v413
      %430 = vst.msk [vmem:[%s172 + $0x78] sm:$0xff] %vm205, %v414
      %s431 = smul.u32 16, %s14
      %p432 = scmp.lt.s32.totalorder %s431, 31
      %s433 = scalar_select %p432, %s431, 31
      %s434 = smul.addr %s433, 8
      %s435 = scalar_lea.vmem %s3, %s434
      // Predicated region
      $region33: #{tpu_custom_call.1} parent=31 // pred_check
        %p436 = pneg %p100
      $region34: #{tpu_custom_call.1} parent=31 // pred_check_branch
        %438 = sbr.rel (%p436) target = $region36
      $region35: #{tpu_custom_call.1} parent=31 // pred_region
        %s439 = smul.u32 16, %s14
      $region36: #{tpu_custom_call.1} parent=31 // pred_fallthru
        _
    $region32: #{tpu_custom_call.1} parent=5 // pred_fallthru
      _
    %p440 = scmp.le.s32.totalorder 2, %s9
    // Predicated region
    $region37: #{tpu_custom_call.1} parent=5 // pred_check
      %p441 = pneg %p440
    $region38: #{tpu_custom_call.1} parent=5 // pred_check_branch
      %443 = sbr.rel (%p441) target = $region40
    $region39: #{tpu_custom_call.1} parent=5 // pred_region
      %s444 = ssub.s32 %s9, 2
      // Predicated region
      $region41: #{tpu_custom_call.1} parent=39 // pred_check
        %p445 = pneg %p106
      $region42: #{tpu_custom_call.1} parent=39 // pred_check_branch
        %447 = sbr.rel (%p445) target = $region44
      $region43: #{tpu_custom_call.1} parent=39 // pred_region
        %s448 = smul.u32 16, %s15
        %p449 = scmp.lt.s32.totalorder %s448, 31
        %s450 = scalar_select %p449, %s448, 31
        %s451 = smul.addr %s450, 8
        %s452 = scalar_lea.vmem %s3, %s451
      $region44: #{tpu_custom_call.1} parent=39 // pred_fallthru
        _
    $region40: #{tpu_custom_call.1} parent=5 // pred_fallthru
      _
  $region6: #{tpu_custom_call.1} parent=0 // loop_footer
    %s13 = sadd.s32 1, %s9
  $region7: #{tpu_custom_call.1} parent=0 // loop_footer_branch
    %8 = sbr.rel target = $region3
  $region8: #{tpu_custom_call.1} parent=0 // loop_exit
    _

</llo_original>
